<compile_context>
chip_gen: v7x
topology: tpu7x:2x2x1
jax: 0.10.0
libtpu: 0.0.40
codegen_flags: <defaults>
</compile_context>

<pallas_src>
import numpy as np
import jax
import jax.numpy as jnp
from jax.experimental import pallas as pl
from jax.experimental.pallas import tpu as pltpu

# Active taps of the type-'B' 3x3 mask, in (kh, kw) order.
_TAPS = ((0, 0), (0, 1), (0, 2), (1, 0), (1, 1))


def _make_kernel(H, W, Cm_p):
    """Builds the fused ResidualBlock kernel for an HxW image."""
    HW = H * W

    def kernel(x_ref, w1_ref, b1_ref, w3_ref, b3_ref, w2_ref, b2_ref,
               o_ref, s_ref):
        # x_ref : (1, C, HW)  bf16     w1_ref: (Cm_p, C)          bf16
        # b1/b3 : (Cm_p, 1)   f32      w3_ref: (Cm_p, 5*Cm_p)     bf16
        # w2_ref: (C, Cm_p)   bf16     b2_ref: (C, 1)             f32
        # o_ref : (1, C, HW)  f32      s_ref : (5*Cm_p, HW)  f32  scratch

        # ---- ReLU(input) -> conv1x1_1 (+bias) -> ReLU ---------------------
        x = jnp.maximum(x_ref[0], 0)                          # (C, HW) bf16
        y = jnp.dot(w1_ref[...], x, preferred_element_type=jnp.float32)
        y = jnp.maximum(y + b1_ref[...], 0.0)                 # (Cm_p, HW) f32

        # ---- masked 3x3 'B' conv: build 5 shifted copies of y -------------
        # Output position f = h*W + w reads input f - d with
        # d = (1-kh)*W + (1-kw).  A shift by d is a static lane-offset store;
        # positions f < d are zero-filled and row-wrap positions are removed
        # by zeroing the first / last *source* column before the shift.
        col = jax.lax.broadcasted_iota(jnp.int32, (Cm_p, HW), 1) % W
        y_no_last = jnp.where(col < W - 1, y, 0.0)    # drop source col W-1
        y_no_first = jnp.where(col > 0, y, 0.0)       # drop source col 0

        def put(t, d, src):
            base = t * Cm_p                           # sublane-aligned block
            if d == 0:
                s_ref[base:base + Cm_p, 0:HW] = src
            else:
                s_ref[base:base + Cm_p, 0:d] = jnp.zeros((Cm_p, d), jnp.float32)
                s_ref[base:base + Cm_p, d:HW] = src[:, :HW - d]

        put(0, W + 1, y_no_last)     # (kh,kw)=(0,0): y[h-1, w-1]
        put(1, W,     y)             # (0,1):         y[h-1, w  ]
        put(2, W - 1, y_no_first)    # (0,2):         y[h-1, w+1]
        put(3, 1,     y_no_last)     # (1,0):         y[h,   w-1]
        put(4, 0,     y)             # (1,1):         y[h,   w  ]

        # ---- one fused MXU matmul over all 5 taps (+bias) -> ReLU ---------
        stacked = s_ref[...].astype(jnp.bfloat16)             # (5*Cm_p, HW)
        z = jnp.dot(w3_ref[...], stacked, preferred_element_type=jnp.float32)
        z = jnp.maximum(z + b3_ref[...], 0.0).astype(jnp.bfloat16)

        # ---- conv1x1_2 (+bias); no final ReLU, no residual add ------------
        out = jnp.dot(w2_ref[...], z, preferred_element_type=jnp.float32)
        o_ref[0] = out + b2_ref[...]                          # (C, HW) f32

    return kernel


def residual_block_pallas(x_nchw, params):
    """x_nchw: (N, C, H, W) float32. Returns (N, C, H, W) float32."""
    w1_t, b1, w3_t, b3, w2_t, b2 = params     # PyTorch layouts (O, I, kH, kW)
    N, C, H, W = x_nchw.shape
    Cm = w1_t.shape[0]
    HW = H * W
    n_taps = len(_TAPS)

    # Pad hidden channels to a full f32 sublane tile so the stacked tap
    # buffer is tile-aligned (padded rows/cols are exactly zero end-to-end).
    Cm_p = ((Cm + 7) // 8) * 8
    pc = Cm_p - Cm

    # NCHW -> (N, C, H*W): a free reshape (no transpose / extra HBM pass).
    x = x_nchw.reshape(N, C, HW).astype(jnp.bfloat16)

    # Weights as (out, in) matrices, bf16 for the MXU; biases stay f32.
    w1 = jnp.pad(w1_t[:, :, 0, 0], ((0, pc), (0, 0))).astype(jnp.bfloat16)
    w2 = jnp.pad(w2_t[:, :, 0, 0], ((0, 0), (0, pc))).astype(jnp.bfloat16)
    w3f = jnp.concatenate(
        [jnp.pad(w3_t[:, :, kh, kw], ((0, pc), (0, pc))) for kh, kw in _TAPS],
        axis=1).astype(jnp.bfloat16)                      # (Cm_p, 5*Cm_p)
    b1c = jnp.pad(b1, (0, pc)).reshape(Cm_p, 1).astype(jnp.float32)
    b3c = jnp.pad(b3, (0, pc)).reshape(Cm_p, 1).astype(jnp.float32)
    b2c = b2.reshape(C, 1).astype(jnp.float32)

    kernel = _make_kernel(H, W, Cm_p)

    out = pl.pallas_call(
        kernel,
        out_shape=jax.ShapeDtypeStruct((N, C, HW), jnp.float32),
        grid_spec=pltpu.PrefetchScalarGridSpec(
            num_scalar_prefetch=0,
            grid=(N,),
            in_specs=[
                pl.BlockSpec((1, C, HW), lambda n: (n, 0, 0)),
                pl.BlockSpec((Cm_p, C), lambda n: (0, 0)),
                pl.BlockSpec((Cm_p, 1), lambda n: (0, 0)),
                pl.BlockSpec((Cm_p, n_taps * Cm_p), lambda n: (0, 0)),
                pl.BlockSpec((Cm_p, 1), lambda n: (0, 0)),
                pl.BlockSpec((C, Cm_p), lambda n: (0, 0)),
                pl.BlockSpec((C, 1), lambda n: (0, 0)),
            ],
            out_specs=pl.BlockSpec((1, C, HW), lambda n: (n, 0, 0)),
            scratch_shapes=[pltpu.VMEM((n_taps * Cm_p, HW), jnp.float32)],
        ),
        compiler_params=pltpu.CompilerParams(
            dimension_semantics=("parallel",)),
    )(x, w1, b1c, w3f, b3c, w2, b2c)

    return out.reshape(N, C, H, W)


def _reference_forward(x_nchw, params):
    """Pure-JAX f32 reference (XLA convs) for validation."""
    w1_t, b1, w3_t, b3, w2_t, b2 = params

    # Type-'B' 3x3 mask (same as the PyTorch buffer).
    mask = np.zeros((3, 3), np.float32)
    mask[:1, :] = 1.0
    mask[1, :2] = 1.0
    w3_masked = w3_t * jnp.asarray(mask)[None, None, :, :]

    def conv(x, w, b, pad):
        y = jax.lax.conv_general_dilated(
            x, w, window_strides=(1, 1), padding=[(pad, pad), (pad, pad)],
            dimension_numbers=("NCHW", "OIHW", "NCHW"))
        return y + b[None, :, None, None]

    y = jnp.maximum(x_nchw, 0.0)
    y = jnp.maximum(conv(y, w1_t, b1, 0), 0.0)
    y = jnp.maximum(conv(y, w3_masked, b3, 1), 0.0)
    return conv(y, w2_t, b2, 0)


if __name__ == "__main__":
    N, C, H, W = 2, 8, 16, 16
    Cm = C // 2

    key = jax.random.PRNGKey(0)
    ks = jax.random.split(key, 7)
    x = jax.random.normal(ks[0], (N, C, H, W), jnp.float32)

    # Deterministic synthetic parameters (PyTorch conv layouts: O, I, kH, kW).
    w1_t = 0.3 * jax.random.normal(ks[1], (Cm, C, 1, 1), jnp.float32)
    b1 = 0.1 * jax.random.normal(ks[2], (Cm,), jnp.float32)
    w3_t = 0.3 * jax.random.normal(ks[3], (Cm, Cm, 3, 3), jnp.float32)
    b3 = 0.1 * jax.random.normal(ks[4], (Cm,), jnp.float32)
    w2_t = 0.3 * jax.random.normal(ks[5], (C, Cm, 1, 1), jnp.float32)
    b2 = 0.1 * jax.random.normal(ks[6], (C,), jnp.float32)
    params = (w1_t, b1, w3_t, b3, w2_t, b2)

    out = jax.block_until_ready(residual_block_pallas(x, params))
    ref = jax.block_until_ready(_reference_forward(x, params))

    # bf16 MXU inputs (f32 accumulation) -> loosened tolerance vs f32 reference.
    np.testing.assert_allclose(np.asarray(out), np.asarray(ref),
                               rtol=5e-2, atol=1e-1)
    print("KERNEL_OK")
</pallas_src>

<mosaic_0001>
module attributes {stable_mosaic.version = 11 : i64} {
  func.func @kernel(%arg0: i32, %arg1: memref<1x8x256xbf16, #tpu.memory_space<vmem>>, %arg2: memref<8x8xbf16, #tpu.memory_space<vmem>>, %arg3: memref<8x1xf32, #tpu.memory_space<vmem>>, %arg4: memref<8x40xbf16, #tpu.memory_space<vmem>>, %arg5: memref<8x1xf32, #tpu.memory_space<vmem>>, %arg6: memref<8x8xbf16, #tpu.memory_space<vmem>>, %arg7: memref<8x1xf32, #tpu.memory_space<vmem>>, %arg8: memref<1x8x256xf32, #tpu.memory_space<vmem>>, %arg9: memref<40x256xf32, #tpu.memory_space<vmem>>) attributes {dimension_semantics = [#tpu.dimension_semantics<parallel>], iteration_bounds = array<i64: 2>, scalar_prefetch = 0 : i64, scratch_operands = 1 : i64, tpu.core_type = #tpu.core_type<tc>, window_params = [{transform_indices = @transform_0, window_bounds = array<i64: 1, 8, 256>}, {pipeline_mode = #tpu.pipeline_mode<synchronous>, transform_indices = @transform_1, window_bounds = array<i64: 8, 8>}, {pipeline_mode = #tpu.pipeline_mode<synchronous>, transform_indices = @transform_2, window_bounds = array<i64: 8, 1>}, {pipeline_mode = #tpu.pipeline_mode<synchronous>, transform_indices = @transform_3, window_bounds = array<i64: 8, 40>}, {pipeline_mode = #tpu.pipeline_mode<synchronous>, transform_indices = @transform_4, window_bounds = array<i64: 8, 1>}, {pipeline_mode = #tpu.pipeline_mode<synchronous>, transform_indices = @transform_5, window_bounds = array<i64: 8, 8>}, {pipeline_mode = #tpu.pipeline_mode<synchronous>, transform_indices = @transform_6, window_bounds = array<i64: 8, 1>}, {transform_indices = @transform_7, window_bounds = array<i64: 1, 8, 256>}]} {
    %c0 = arith.constant 0 : index
    %c0_0 = arith.constant 0 : index
    %c0_1 = arith.constant 0 : index
    %0 = vector.load %arg1[%c0, %c0_0, %c0_1] : memref<1x8x256xbf16, #tpu.memory_space<vmem>>, vector<1x8x256xbf16>
    %1 = vector.shape_cast %0 : vector<1x8x256xbf16> to vector<8x256xbf16>
    %cst = arith.constant 0.000000e+00 : bf16
    %2 = vector.broadcast %cst : bf16 to vector<8x256xbf16>
    %3 = arith.maximumf %1, %2 : vector<8x256xbf16>
    %c0_2 = arith.constant 0 : index
    %c0_3 = arith.constant 0 : index
    %4 = vector.load %arg2[%c0_2, %c0_3] : memref<8x8xbf16, #tpu.memory_space<vmem>>, vector<8x8xbf16>
    %cst_4 = arith.constant dense<0.000000e+00> : vector<8x256xf32>
    %5 = tpu.matmul %4, %3, %cst_4 {dimension_numbers = #tpu.dot_dimension_numbers<[1], [0], [0], [1], [0, 0, 1, 1], [], []>} : vector<8x8xbf16>, vector<8x256xbf16>, vector<8x256xf32> -> vector<8x256xf32>
    %c0_5 = arith.constant 0 : index
    %c0_6 = arith.constant 0 : index
    %6 = vector.load %arg3[%c0_5, %c0_6] : memref<8x1xf32, #tpu.memory_space<vmem>>, vector<8x1xf32>
    %7 = vector.broadcast %6 : vector<8x1xf32> to vector<8x256xf32>
    %8 = arith.addf %5, %7 : vector<8x256xf32>
    %cst_7 = arith.constant 0.000000e+00 : f32
    %9 = vector.broadcast %cst_7 : f32 to vector<8x256xf32>
    %10 = arith.maximumf %8, %9 : vector<8x256xf32>
    %11 = tpu.iota {dimensions = array<i32: 1>} : vector<8x256xi32>
    %c16_i32 = arith.constant 16 : i32
    %c0_i32 = arith.constant 0 : i32
    %12 = arith.cmpi eq, %c16_i32, %c0_i32 : i32
    %c1_i32 = arith.constant 1 : i32
    %13 = arith.select %12, %c1_i32, %c16_i32 : i32
    %14 = vector.broadcast %13 : i32 to vector<8x256xi32>
    %15 = arith.remsi %11, %14 : vector<8x256xi32>
    %c0_i32_8 = arith.constant 0 : i32
    %16 = vector.broadcast %c0_i32_8 : i32 to vector<8x256xi32>
    %17 = arith.cmpi ne, %15, %16 : vector<8x256xi32>
    %c0_i32_9 = arith.constant 0 : i32
    %18 = vector.broadcast %c0_i32_9 : i32 to vector<8x256xi32>
    %19 = arith.cmpi slt, %15, %18 : vector<8x256xi32>
    %c0_i32_10 = arith.constant 0 : i32
    %20 = arith.cmpi slt, %13, %c0_i32_10 : i32
    %21 = vector.broadcast %20 : i1 to vector<8x256xi1>
    %22 = vector.broadcast %21 : vector<8x256xi1> to vector<8x256xi1>
    %23 = arith.xori %19, %22 : vector<8x256xi1>
    %24 = arith.andi %23, %17 : vector<8x256xi1>
    %25 = vector.broadcast %13 : i32 to vector<8x256xi32>
    %26 = arith.addi %15, %25 : vector<8x256xi32>
    %27 = arith.select %24, %26, %15 : vector<8x256xi1>, vector<8x256xi32>
    %c15_i32 = arith.constant 15 : i32
    %28 = vector.broadcast %c15_i32 : i32 to vector<8x256xi32>
    %29 = arith.cmpi slt, %27, %28 : vector<8x256xi32>
    %cst_11 = arith.constant 0.000000e+00 : f32
    %30 = vector.broadcast %cst_11 : f32 to vector<8x256xf32>
    %31 = arith.select %29, %10, %30 : vector<8x256xi1>, vector<8x256xf32>
    %c0_i32_12 = arith.constant 0 : i32
    %32 = vector.broadcast %c0_i32_12 : i32 to vector<8x256xi32>
    %33 = arith.cmpi sgt, %27, %32 : vector<8x256xi32>
    %cst_13 = arith.constant 0.000000e+00 : f32
    %34 = vector.broadcast %cst_13 : f32 to vector<8x256xf32>
    %35 = arith.select %33, %10, %34 : vector<8x256xi1>, vector<8x256xf32>
    %cst_14 = arith.constant 0.000000e+00 : f32
    %36 = vector.broadcast %cst_14 : f32 to vector<8x17xf32>
    %c0_15 = arith.constant 0 : index
    %c0_16 = arith.constant 0 : index
    %37 = vector.load %arg9[%c0_15, %c0_16] : memref<40x256xf32, #tpu.memory_space<vmem>>, vector<8x17xf32>
    tpu.vector_store %arg9[%c0_15, %c0_16], %36 {strides = array<i32>} : memref<40x256xf32, #tpu.memory_space<vmem>>, vector<8x17xf32>,
    %38 = vector.extract_strided_slice %31 {offsets = [0, 0], sizes = [8, 239], strides = [1, 1]} : vector<8x256xf32> to vector<8x239xf32>
    %c0_17 = arith.constant 0 : index
    %c17 = arith.constant 17 : index
    %39 = vector.load %arg9[%c0_17, %c17] : memref<40x256xf32, #tpu.memory_space<vmem>>, vector<8x239xf32>
    tpu.vector_store %arg9[%c0_17, %c17], %38 {strides = array<i32>} : memref<40x256xf32, #tpu.memory_space<vmem>>, vector<8x239xf32>,
    %cst_18 = arith.constant 0.000000e+00 : f32
    %40 = vector.broadcast %cst_18 : f32 to vector<8x16xf32>
    %c8 = arith.constant 8 : index
    %c0_19 = arith.constant 0 : index
    %41 = vector.load %arg9[%c8, %c0_19] : memref<40x256xf32, #tpu.memory_space<vmem>>, vector<8x16xf32>
    tpu.vector_store %arg9[%c8, %c0_19], %40 {strides = array<i32>} : memref<40x256xf32, #tpu.memory_space<vmem>>, vector<8x16xf32>,
    %42 = vector.extract_strided_slice %10 {offsets = [0, 0], sizes = [8, 240], strides = [1, 1]} : vector<8x256xf32> to vector<8x240xf32>
    %c8_20 = arith.constant 8 : index
    %c16 = arith.constant 16 : index
    %43 = vector.load %arg9[%c8_20, %c16] : memref<40x256xf32, #tpu.memory_space<vmem>>, vector<8x240xf32>
    tpu.vector_store %arg9[%c8_20, %c16], %42 {strides = array<i32>} : memref<40x256xf32, #tpu.memory_space<vmem>>, vector<8x240xf32>,
    %cst_21 = arith.constant 0.000000e+00 : f32
    %44 = vector.broadcast %cst_21 : f32 to vector<8x15xf32>
    %c16_22 = arith.constant 16 : index
    %c0_23 = arith.constant 0 : index
    %45 = vector.load %arg9[%c16_22, %c0_23] : memref<40x256xf32, #tpu.memory_space<vmem>>, vector<8x15xf32>
    tpu.vector_store %arg9[%c16_22, %c0_23], %44 {strides = array<i32>} : memref<40x256xf32, #tpu.memory_space<vmem>>, vector<8x15xf32>,
    %46 = vector.extract_strided_slice %35 {offsets = [0, 0], sizes = [8, 241], strides = [1, 1]} : vector<8x256xf32> to vector<8x241xf32>
    %c16_24 = arith.constant 16 : index
    %c15 = arith.constant 15 : index
    %47 = vector.load %arg9[%c16_24, %c15] : memref<40x256xf32, #tpu.memory_space<vmem>>, vector<8x241xf32>
    tpu.vector_store %arg9[%c16_24, %c15], %46 {strides = array<i32>} : memref<40x256xf32, #tpu.memory_space<vmem>>, vector<8x241xf32>,
    %cst_25 = arith.constant 0.000000e+00 : f32
    %48 = vector.broadcast %cst_25 : f32 to vector<8x1xf32>
    %c24 = arith.constant 24 : index
    %c0_26 = arith.constant 0 : index
    %49 = vector.load %arg9[%c24, %c0_26] : memref<40x256xf32, #tpu.memory_space<vmem>>, vector<8x1xf32>
    tpu.vector_store %arg9[%c24, %c0_26], %48 {strides = array<i32>} : memref<40x256xf32, #tpu.memory_space<vmem>>, vector<8x1xf32>,
    %50 = vector.extract_strided_slice %31 {offsets = [0, 0], sizes = [8, 255], strides = [1, 1]} : vector<8x256xf32> to vector<8x255xf32>
    %c24_27 = arith.constant 24 : index
    %c1 = arith.constant 1 : index
    %51 = vector.load %arg9[%c24_27, %c1] : memref<40x256xf32, #tpu.memory_space<vmem>>, vector<8x255xf32>
    tpu.vector_store %arg9[%c24_27, %c1], %50 {strides = array<i32>} : memref<40x256xf32, #tpu.memory_space<vmem>>, vector<8x255xf32>,
    %c32 = arith.constant 32 : index
    %c0_28 = arith.constant 0 : index
    %52 = vector.load %arg9[%c32, %c0_28] : memref<40x256xf32, #tpu.memory_space<vmem>>, vector<8x256xf32>
    tpu.vector_store %arg9[%c32, %c0_28], %10 {strides = array<i32>} : memref<40x256xf32, #tpu.memory_space<vmem>>, vector<8x256xf32>,
    %c0_29 = arith.constant 0 : index
    %c0_30 = arith.constant 0 : index
    %53 = vector.load %arg9[%c0_29, %c0_30] : memref<40x256xf32, #tpu.memory_space<vmem>>, vector<40x256xf32>
    %54 = arith.truncf %53 : vector<40x256xf32> to vector<40x256xbf16>
    %c0_31 = arith.constant 0 : index
    %c0_32 = arith.constant 0 : index
    %55 = vector.load %arg4[%c0_31, %c0_32] : memref<8x40xbf16, #tpu.memory_space<vmem>>, vector<8x40xbf16>
    %cst_33 = arith.constant dense<0.000000e+00> : vector<8x256xf32>
    %56 = tpu.matmul %55, %54, %cst_33 {dimension_numbers = #tpu.dot_dimension_numbers<[1], [0], [0], [1], [0, 0, 1, 1], [], []>} : vector<8x40xbf16>, vector<40x256xbf16>, vector<8x256xf32> -> vector<8x256xf32>
    %c0_34 = arith.constant 0 : index
    %c0_35 = arith.constant 0 : index
    %57 = vector.load %arg5[%c0_34, %c0_35] : memref<8x1xf32, #tpu.memory_space<vmem>>, vector<8x1xf32>
    %58 = vector.broadcast %57 : vector<8x1xf32> to vector<8x256xf32>
    %59 = arith.addf %56, %58 : vector<8x256xf32>
    %cst_36 = arith.constant 0.000000e+00 : f32
    %60 = vector.broadcast %cst_36 : f32 to vector<8x256xf32>
    %61 = arith.maximumf %59, %60 : vector<8x256xf32>
    %62 = arith.truncf %61 : vector<8x256xf32> to vector<8x256xbf16>
    %c0_37 = arith.constant 0 : index
    %c0_38 = arith.constant 0 : index
    %63 = vector.load %arg6[%c0_37, %c0_38] : memref<8x8xbf16, #tpu.memory_space<vmem>>, vector<8x8xbf16>
    %cst_39 = arith.constant dense<0.000000e+00> : vector<8x256xf32>
    %64 = tpu.matmul %63, %62, %cst_39 {dimension_numbers = #tpu.dot_dimension_numbers<[1], [0], [0], [1], [0, 0, 1, 1], [], []>} : vector<8x8xbf16>, vector<8x256xbf16>, vector<8x256xf32> -> vector<8x256xf32>
    %c0_40 = arith.constant 0 : index
    %c0_41 = arith.constant 0 : index
    %65 = vector.load %arg7[%c0_40, %c0_41] : memref<8x1xf32, #tpu.memory_space<vmem>>, vector<8x1xf32>
    %66 = vector.broadcast %65 : vector<8x1xf32> to vector<8x256xf32>
    %67 = arith.addf %64, %66 : vector<8x256xf32>
    %c0_42 = arith.constant 0 : index
    %c0_43 = arith.constant 0 : index
    %c0_44 = arith.constant 0 : index
    %68 = vector.load %arg8[%c0_42, %c0_43, %c0_44] : memref<1x8x256xf32, #tpu.memory_space<vmem>>, vector<1x8x256xf32>
    %69 = vector.shape_cast %68 : vector<1x8x256xf32> to vector<8x256xf32>
    %70 = vector.shape_cast %67 : vector<8x256xf32> to vector<1x8x256xf32>
    tpu.vector_store %arg8[%c0_42, %c0_43, %c0_44], %70 {strides = array<i32>} : memref<1x8x256xf32, #tpu.memory_space<vmem>>, vector<1x8x256xf32>,
    return
  }
  func.func @transform_0(%arg0: i32) -> (i32, i32, i32) {
    %c0_i32 = arith.constant 0 : i32
    %c0_i32_0 = arith.constant 0 : i32
    %c0_i32_1 = arith.constant 0 : i32
    return %arg0, %c0_i32, %c0_i32_0 : i32, i32, i32
  }
  func.func @transform_1(%arg0: i32) -> (i32, i32) {
    %c0_i32 = arith.constant 0 : i32
    %c0_i32_0 = arith.constant 0 : i32
    %c0_i32_1 = arith.constant 0 : i32
    return %c0_i32, %c0_i32_0 : i32, i32
  }
  func.func @transform_2(%arg0: i32) -> (i32, i32) {
    %c0_i32 = arith.constant 0 : i32
    %c0_i32_0 = arith.constant 0 : i32
    %c0_i32_1 = arith.constant 0 : i32
    return %c0_i32, %c0_i32_0 : i32, i32
  }
  func.func @transform_3(%arg0: i32) -> (i32, i32) {
    %c0_i32 = arith.constant 0 : i32
    %c0_i32_0 = arith.constant 0 : i32
    %c0_i32_1 = arith.constant 0 : i32
    return %c0_i32, %c0_i32_0 : i32, i32
  }
  func.func @transform_4(%arg0: i32) -> (i32, i32) {
    %c0_i32 = arith.constant 0 : i32
    %c0_i32_0 = arith.constant 0 : i32
    %c0_i32_1 = arith.constant 0 : i32
    return %c0_i32, %c0_i32_0 : i32, i32
  }
  func.func @transform_5(%arg0: i32) -> (i32, i32) {
    %c0_i32 = arith.constant 0 : i32
    %c0_i32_0 = arith.constant 0 : i32
    %c0_i32_1 = arith.constant 0 : i32
    return %c0_i32, %c0_i32_0 : i32, i32
  }
  func.func @transform_6(%arg0: i32) -> (i32, i32) {
    %c0_i32 = arith.constant 0 : i32
    %c0_i32_0 = arith.constant 0 : i32
    %c0_i32_1 = arith.constant 0 : i32
    return %c0_i32, %c0_i32_0 : i32, i32
  }
  func.func @transform_7(%arg0: i32) -> (i32, i32, i32) {
    %c0_i32 = arith.constant 0 : i32
    %c0_i32_0 = arith.constant 0 : i32
    %c0_i32_1 = arith.constant 0 : i32
    return %arg0, %c0_i32, %c0_i32_0 : i32, i32, i32
  }
}

</mosaic_0001>

<llo_original>
// kernel: tpu_custom_call.1
$region0: #{tpu_custom_call.1}
  #allocation0 [shape = 'u32[]', space=smem, size = 0x4, offset = 0x4, fixed_abs, tag = 'smem constant byte address 0x4 - core index']
  #allocation1 [shape = 'u32[144,128]{1,0:T(1,128)}', space=vmem, size = 0x12000, scoped, tag = 'internal scratch']
  #allocation2 [shape = 'f32[40,256]{1,0:T(8,128)}', space=vmem, size = 0xa000, scoped, tag = 'scratch operand']
  %s0 = inlined_call_operand.vmem [shape: bf16[2,8,256], index: 0, kind: input, shape index: {}]
  %s1 = inlined_call_operand.vmem [shape: bf16[8,8], index: 1, kind: input, shape index: {}]
  %s2 = inlined_call_operand.vmem [shape: f32[8,1], index: 2, kind: input, shape index: {}]
  %s3 = inlined_call_operand.vmem [shape: bf16[8,40], index: 3, kind: input, shape index: {}]
  %s4 = inlined_call_operand.vmem [shape: f32[8,1], index: 4, kind: input, shape index: {}]
  %s5 = inlined_call_operand.vmem [shape: bf16[8,8], index: 5, kind: input, shape index: {}]
  %s6 = inlined_call_operand.vmem [shape: f32[8,1], index: 6, kind: input, shape index: {}]
  %s7 = inlined_call_operand.hbm [shape: f32[2,8,256], index: 7, kind: output, shape index: {}]
  %s8 = sld [smem:[#allocation0]]
  $region61: #{tpu_custom_call.1} parent=0
    _
  %s10 = ssub.s32 1, %s8
  %s11 = scalar_select 0, %s10, %s8
  $region1: #{tpu_custom_call.1} parent=0
    #allocation3 [shape = 'u8[16384]{0}', space=vmem, size = 0x4000, scoped, tag = 'output window, operand 0']
    #allocation4 [shape = 's32[2]{0}', space=sflag, size = 0x8, scoped, tag = 'scoped memory for tpu_custom_call.1']
    %12 = vsyncpa [#allocation4], 0
    %s13 = scalar_lea.sflag [#allocation4], 1
    %14 = vsyncpa %s13, 0
    loop: start=0, step=1, limit=4
    $region2: #{tpu_custom_call.1} parent=1 // loop_pre_header
      _
    $region3: #{tpu_custom_call.1} parent=1 // loop_header
      %s16 = sphi 0, %s20
      %p17 = scmp.ge.s32.totalorder %s16, 4
      %s26 = sphi 0, %s28
      %s29 = sphi 0, %s26
      %s30 = sphi 0, %s29
      %s46 = sphi 0, %s30
      %s50 = sphi 0, %s50
      %s52 = sphi 0, %s50
      %s53 = sphi 0, %s52
      %s67 = sphi 0, %s53
      %s71 = sphi 0, %s71
      %s73 = sphi 0, %s71
      %s74 = sphi 0, %s73
      %s88 = sphi 0, %s74
      %s92 = sphi 0, %s92
      %s94 = sphi 0, %s92
      %s95 = sphi 0, %s94
      %s109 = sphi 0, %s95
      %s113 = sphi 0, %s113
      %s115 = sphi 0, %s113
      %s116 = sphi 0, %s115
      %s130 = sphi 0, %s116
      %s134 = sphi 0, %s134
      %s136 = sphi 0, %s134
      %s137 = sphi 0, %s136
      %s151 = sphi 0, %s137
      %s155 = sphi 0, %s155
      %s157 = sphi 0, %s155
      %s158 = sphi 0, %s157
      %s172 = sphi 0, %s158
      %s178 = sphi 0, %s180
      %s181 = sphi 0, %s178
      %s182 = sphi 0, %s181
      %s198 = sphi 0, %s182
    $region4: #{tpu_custom_call.1} parent=1 // loop_header_branch
      %19 = sbr.rel (%p17) target = $region8
    $region5: #{tpu_custom_call.1} parent=1 // loop_body
      %s21 = ssub.s32 %s16, 1
      %s22 = ssub.s32 %s16, 2
      %s23 = sadd.s32 %s16, 1
      %s24 = ssub.s32 %s16, %s23
      %p25 = scmp.eq.s32.totalorder %s24, 0
      %s27 = sadd.s32 %s26, 1
      %s28 = scalar_select %p25, %s26, %s27
      %p31 = pneg %p25
      %p32 = scmp.eq.s32.totalorder %s16, 1
      %p33 = por %p31, %p32
      %p34 = scmp.ne.s32.totalorder %s26, %s29
      %p35 = scmp.eq.s32.totalorder %s16, 0
      %p36 = por %p34, %p35
      %p37 = scmp.ne.s32.totalorder %s26, %s29
      %p38 = scmp.eq.s32.totalorder %s21, 1
      %p39 = por %p37, %p38
      %p40 = scmp.ne.s32.totalorder %s29, %s30
      %p41 = scmp.eq.s32.totalorder %s21, 0
      %p42 = por %p40, %p41
      %p43 = scmp.ne.s32.totalorder %s29, %s30
      %p44 = scmp.eq.s32.totalorder %s22, 1
      %p45 = por %p43, %p44
      %p47 = scmp.ne.s32.totalorder %s30, %s46
      %p48 = scmp.eq.s32.totalorder %s22, 0
      %p49 = por %p47, %p48
      %s51 = sadd.s32 %s50, 1
      %p54 = scmp.eq.s32.totalorder %s16, 1
      %p55 = scmp.ne.s32.totalorder %s50, %s52
      %p56 = scmp.eq.s32.totalorder %s16, 0
      %p57 = por %p55, %p56
      %p58 = scmp.ne.s32.totalorder %s50, %s52
      %p59 = scmp.eq.s32.totalorder %s21, 1
      %p60 = por %p58, %p59
      %p61 = scmp.ne.s32.totalorder %s52, %s53
      %p62 = scmp.eq.s32.totalorder %s21, 0
      %p63 = por %p61, %p62
      %p64 = scmp.ne.s32.totalorder %s52, %s53
      %p65 = scmp.eq.s32.totalorder %s22, 1
      %p66 = por %p64, %p65
      %p68 = scmp.ne.s32.totalorder %s53, %s67
      %p69 = scmp.eq.s32.totalorder %s22, 0
      %p70 = por %p68, %p69
      %s72 = sadd.s32 %s71, 1
      %p75 = scmp.eq.s32.totalorder %s16, 1
      %p76 = scmp.ne.s32.totalorder %s71, %s73
      %p77 = scmp.eq.s32.totalorder %s16, 0
      %p78 = por %p76, %p77
      %p79 = scmp.ne.s32.totalorder %s71, %s73
      %p80 = scmp.eq.s32.totalorder %s21, 1
      %p81 = por %p79, %p80
      %p82 = scmp.ne.s32.totalorder %s73, %s74
      %p83 = scmp.eq.s32.totalorder %s21, 0
      %p84 = por %p82, %p83
      %p85 = scmp.ne.s32.totalorder %s73, %s74
      %p86 = scmp.eq.s32.totalorder %s22, 1
      %p87 = por %p85, %p86
      %p89 = scmp.ne.s32.totalorder %s74, %s88
      %p90 = scmp.eq.s32.totalorder %s22, 0
      %p91 = por %p89, %p90
      %s93 = sadd.s32 %s92, 1
      %p96 = scmp.eq.s32.totalorder %s16, 1
      %p97 = scmp.ne.s32.totalorder %s92, %s94
      %p98 = scmp.eq.s32.totalorder %s16, 0
      %p99 = por %p97, %p98
      %p100 = scmp.ne.s32.totalorder %s92, %s94
      %p101 = scmp.eq.s32.totalorder %s21, 1
      %p102 = por %p100, %p101
      %p103 = scmp.ne.s32.totalorder %s94, %s95
      %p104 = scmp.eq.s32.totalorder %s21, 0
      %p105 = por %p103, %p104
      %p106 = scmp.ne.s32.totalorder %s94, %s95
      %p107 = scmp.eq.s32.totalorder %s22, 1
      %p108 = por %p106, %p107
      %p110 = scmp.ne.s32.totalorder %s95, %s109
      %p111 = scmp.eq.s32.totalorder %s22, 0
      %p112 = por %p110, %p111
      %s114 = sadd.s32 %s113, 1
      %p117 = scmp.eq.s32.totalorder %s16, 1
      %p118 = scmp.ne.s32.totalorder %s113, %s115
      %p119 = scmp.eq.s32.totalorder %s16, 0
      %p120 = por %p118, %p119
      %p121 = scmp.ne.s32.totalorder %s113, %s115
      %p122 = scmp.eq.s32.totalorder %s21, 1
      %p123 = por %p121, %p122
      %p124 = scmp.ne.s32.totalorder %s115, %s116
      %p125 = scmp.eq.s32.totalorder %s21, 0
      %p126 = por %p124, %p125
      %p127 = scmp.ne.s32.totalorder %s115, %s116
      %p128 = scmp.eq.s32.totalorder %s22, 1
      %p129 = por %p127, %p128
      %p131 = scmp.ne.s32.totalorder %s116, %s130
      %p132 = scmp.eq.s32.totalorder %s22, 0
      %p133 = por %p131, %p132
      %s135 = sadd.s32 %s134, 1
      %p138 = scmp.eq.s32.totalorder %s16, 1
      %p139 = scmp.ne.s32.totalorder %s134, %s136
      %p140 = scmp.eq.s32.totalorder %s16, 0
      %p141 = por %p139, %p140
      %p142 = scmp.ne.s32.totalorder %s134, %s136
      %p143 = scmp.eq.s32.totalorder %s21, 1
      %p144 = por %p142, %p143
      %p145 = scmp.ne.s32.totalorder %s136, %s137
      %p146 = scmp.eq.s32.totalorder %s21, 0
      %p147 = por %p145, %p146
      %p148 = scmp.ne.s32.totalorder %s136, %s137
      %p149 = scmp.eq.s32.totalorder %s22, 1
      %p150 = por %p148, %p149
      %p152 = scmp.ne.s32.totalorder %s137, %s151
      %p153 = scmp.eq.s32.totalorder %s22, 0
      %p154 = por %p152, %p153
      %s156 = sadd.s32 %s155, 1
      %p159 = scmp.eq.s32.totalorder %s16, 1
      %p160 = scmp.ne.s32.totalorder %s155, %s157
      %p161 = scmp.eq.s32.totalorder %s16, 0
      %p162 = por %p160, %p161
      %p163 = scmp.ne.s32.totalorder %s155, %s157
      %p164 = scmp.eq.s32.totalorder %s21, 1
      %p165 = por %p163, %p164
      %p166 = scmp.ne.s32.totalorder %s157, %s158
      %p167 = scmp.eq.s32.totalorder %s21, 0
      %p168 = por %p166, %p167
      %p169 = scmp.ne.s32.totalorder %s157, %s158
      %p170 = scmp.eq.s32.totalorder %s22, 1
      %p171 = por %p169, %p170
      %p173 = scmp.ne.s32.totalorder %s158, %s172
      %p174 = scmp.eq.s32.totalorder %s22, 0
      %p175 = por %p173, %p174
      %s176 = ssub.s32 %s16, %s23
      %p177 = scmp.eq.s32.totalorder %s176, 0
      %s179 = sadd.s32 %s178, 1
      %s180 = scalar_select %p177, %s178, %s179
      %p183 = pneg %p177
      %p184 = scmp.eq.s32.totalorder %s16, 1
      %p185 = por %p183, %p184
      %p186 = scmp.ne.s32.totalorder %s178, %s181
      %p187 = scmp.eq.s32.totalorder %s16, 0
      %p188 = por %p186, %p187
      %p189 = scmp.ne.s32.totalorder %s178, %s181
      %p190 = scmp.eq.s32.totalorder %s21, 1
      %p191 = por %p189, %p190
      %p192 = scmp.ne.s32.totalorder %s181, %s182
      %p193 = scmp.eq.s32.totalorder %s21, 0
      %p194 = por %p192, %p193
      %p195 = scmp.ne.s32.totalorder %s181, %s182
      %p196 = scmp.eq.s32.totalorder %s22, 1
      %p197 = por %p195, %p196
      %p199 = scmp.ne.s32.totalorder %s182, %s198
      %p200 = scmp.eq.s32.totalorder %s22, 0
      %p201 = por %p199, %p200
      %p202 = scmp.le.s32.totalorder 1, %s16
      %p203 = scmp.lt.s32.totalorder %s16, 3
      %p204 = pnand %p202, %p203
      %p205 = pneg %p204
      // Predicated region
      $region9: #{tpu_custom_call.1} parent=5 // pred_check
        _
      $region10: #{tpu_custom_call.1} parent=5 // pred_check_branch
        %207 = sbr.rel (%p204) target = $region12
      $region11: #{tpu_custom_call.1} parent=5 // pred_region
        %s208 = ssub.s32 %s16, 1
        // Predicated region
        $region13: #{tpu_custom_call.1} parent=11 // pred_check
          %p209 = pneg %p63
        $region14: #{tpu_custom_call.1} parent=11 // pred_check_branch
          %211 = sbr.rel (%p209) target = $region16
        $region15: #{tpu_custom_call.1} parent=11 // pred_region
          _
        $region16: #{tpu_custom_call.1} parent=11 // pred_fallthru
          _
        // Predicated region
        $region17: #{tpu_custom_call.1} parent=11 // pred_check
          %p212 = pneg %p84
        $region18: #{tpu_custom_call.1} parent=11 // pred_check_branch
          %214 = sbr.rel (%p212) target = $region20
        $region19: #{tpu_custom_call.1} parent=11 // pred_region
          _
        $region20: #{tpu_custom_call.1} parent=11 // pred_fallthru
          _
        // Predicated region
        $region21: #{tpu_custom_call.1} parent=11 // pred_check
          %p215 = pneg %p105
        $region22: #{tpu_custom_call.1} parent=11 // pred_check_branch
          %217 = sbr.rel (%p215) target = $region24
        $region23: #{tpu_custom_call.1} parent=11 // pred_region
          _
        $region24: #{tpu_custom_call.1} parent=11 // pred_fallthru
          _
        // Predicated region
        $region25: #{tpu_custom_call.1} parent=11 // pred_check
          %p218 = pneg %p126
        $region26: #{tpu_custom_call.1} parent=11 // pred_check_branch
          %220 = sbr.rel (%p218) target = $region28
        $region27: #{tpu_custom_call.1} parent=11 // pred_region
          _
        $region28: #{tpu_custom_call.1} parent=11 // pred_fallthru
          _
        // Predicated region
        $region29: #{tpu_custom_call.1} parent=11 // pred_check
          %p221 = pneg %p147
        $region30: #{tpu_custom_call.1} parent=11 // pred_check_branch
          %223 = sbr.rel (%p221) target = $region32
        $region31: #{tpu_custom_call.1} parent=11 // pred_region
          _
        $region32: #{tpu_custom_call.1} parent=11 // pred_fallthru
          _
        // Predicated region
        $region33: #{tpu_custom_call.1} parent=11 // pred_check
          %p224 = pneg %p168
        $region34: #{tpu_custom_call.1} parent=11 // pred_check_branch
          %226 = sbr.rel (%p224) target = $region36
        $region35: #{tpu_custom_call.1} parent=11 // pred_region
          _
        $region36: #{tpu_custom_call.1} parent=11 // pred_fallthru
          _
      $region12: #{tpu_custom_call.1} parent=5 // pred_fallthru
        _
      %p227 = scmp.lt.s32.totalorder %s16, 2
      // Predicated region
      $region37: #{tpu_custom_call.1} parent=5 // pred_check
        %p228 = pneg %p227
      $region38: #{tpu_custom_call.1} parent=5 // pred_check_branch
        %230 = sbr.rel (%p228) target = $region40
      $region39: #{tpu_custom_call.1} parent=5 // pred_region
        // Predicated region
        $region41: #{tpu_custom_call.1} parent=39 // pred_check
          %p231 = pneg %p36
        $region42: #{tpu_custom_call.1} parent=39 // pred_check_branch
          %233 = sbr.rel (%p231) target = $region44
        $region43: #{tpu_custom_call.1} parent=39 // pred_region
          %p234 = scmp.lt.s32.totalorder %s16, 1
          %s235 = scalar_select %p234, %s16, 1
          %s236 = smul.addr %s235, 2
          %s237 = smul.addr %s236, 4
          %s238 = scalar_lea.vmem %s0, %s237
        $region44: #{tpu_custom_call.1} parent=39 // pred_fallthru
          _
      $region40: #{tpu_custom_call.1} parent=5 // pred_fallthru
        _
      %p239 = scmp.le.s32.totalorder 1, %s16
      %p240 = scmp.lt.s32.totalorder %s16, 3
      %p241 = pnand %p239, %p240
      %p242 = pneg %p241
      // Predicated region
      $region45: #{tpu_custom_call.1} parent=5 // pred_check
        _
      $region46: #{tpu_custom_call.1} parent=5 // pred_check_branch
        %244 = sbr.rel (%p241) target = $region48
      $region47: #{tpu_custom_call.1} parent=5 // pred_region
        %s245 = ssub.s32 %s16, 1
        %p246 = scmp.lt.s32.totalorder %s21, 1
        %s247 = scalar_select %p246, %s21, 1
        %s248 = smul.addr %s247, 2
        %s249 = smul.addr %s248, 4
        %s250 = scalar_lea.vmem %s0, %s249
        %p251 = pneg %p42
        %p252 = pneg %p39
        %p253 = pneg %p63
        %p254 = pneg %p60
        %p255 = pneg %p84
        %p256 = pneg %p81
        %p257 = pneg %p105
        %p258 = pneg %p102
        %p259 = pneg %p126
        %p260 = pneg %p123
        %p261 = pneg %p147
        %p262 = pneg %p144
        %p263 = pneg %p168
        %p264 = pneg %p165
        %p265 = pneg %p194
        %p266 = pneg %p191
        %s267 = sand.u32 %s181, 1
        %s268 = scalar_lea.sflag [#allocation4], %s267
        %s269 = sand.u32 %s181, 1
        %s270 = smul.addr %s269, 16
        %s271 = scalar_lea.vmem [#allocation3], %s270
        %p272 = scmp.lt.s32.totalorder %s21, 1
        %s273 = scalar_select %p272, %s21, 1
        %s274 = smul.addr %s273, 2
        %s275 = smul.addr %s274, 4
        %s276 = scalar_lea.vmem %s0, %s275
        %v278 = vld [vmem:[%s276] sm:$0xff]
        %v279 = vmax.bf16 %v278, 0
        %v280 = vld [vmem:[%s1] sm:$0xf]
        %v281 = vld [vmem:[%s2] sm:$0xff]
        %283 = vset.pattern.permute.xlu0 0
        %284 = vperm.xlu0 %283, %v281
        %v285 = vpop.permute.xlu0 %284
        %v288 = vunpack.c.l.b16 %v279
        %v289 = vunpack.c.h.b16 %v279
        %v290 = vpack.c.b16 %v288, %v288
        %v291 = vpack.c.b16 %v289, %v289
        %vm292 = vcmask 64512
        %v294 = vsel %vm292, %v280, 0
        %vm296 = vcmask 1043456
        %v298 = vsel %vm296, %v290, 0
        %v301 = vsel %vm296, %v291, 0
        %303 = vmatprep.subr.bf16.mxu0 %v301
        %304 = vmatpush1.bf16.msra.mxu0 %v298
        %305 = vmatprep.subr.bf16.mxu0 0
        %306 = vmatpush1.bf16.msra.mxu0 0
        %307 = vmatprep.subr.bf16.mxu0 0
        %308 = vmatpush1.bf16.msra.mxu0 0
        %309 = vmatprep.subr.bf16.mxu0 0
        %310 = vmatpush1.bf16.msra.mxu0 0
        %311 = vmatprep.subr.bf16.mxu0 0
        %312 = vmatpush1.bf16.msra.mxu0 0
        %313 = vmatprep.subr.bf16.mxu0 0
        %314 = vmatpush1.bf16.msra.mxu0 0
        %315 = vmatprep.subr.bf16.mxu0 0
        %316 = vmatpush1.bf16.msra.mxu0 0
        %317 = vmatprep.subr.bf16.mxu0 0
        %318 = vmatpush1.bf16.msra.mxu0 0
        %319 = vmatprep.subr.bf16.mxu0 0
        %320 = vmatpush1.bf16.msra.mxu0 0
        %321 = vmatprep.subr.bf16.mxu0 0
        %322 = vmatpush1.bf16.msra.mxu0 0
        %323 = vmatprep.subr.bf16.mxu0 0
        %324 = vmatpush1.bf16.msra.mxu0 0
        %325 = vmatprep.subr.bf16.mxu0 0
        %326 = vmatpush1.bf16.msra.mxu0 0
        %327 = vmatprep.subr.bf16.mxu0 0
        %328 = vmatpush1.bf16.msra.mxu0 0
        %329 = vmatprep.subr.bf16.mxu0 0
        %330 = vmatpush1.bf16.msra.mxu0 0
        %331 = vmatprep.subr.bf16.mxu0 0
        %332 = vmatpush1.bf16.msra.mxu0 0
        %333 = vmatprep.subr.bf16.mxu0 0
        %334 = vmatpush1.bf16.msra.mxu0 0
        %335 = vmatprep.mubr.bf16.mxu0 0
        %336 = vmatmul.mubr.bf16.gmra.mrb[0].mxu0 %v294
        %v337 = vpop.f32.mrb[0].mxu0
        %v338 = vadd.f32 %v285, %v337
        %v339 = vpop.f32.mrb[0].mxu0
        %v340 = vadd.f32 %v285, %v339
        %v341 = vpop.f32.mrb[0].mxu0
        %v342 = vpop.f32.mrb[0].mxu0
        %343 = vdwg.mxu0
        %v344 = vmax.f32 %v338, 0.0
        %v345 = vmax.f32 %v340, 0.0
        %v346 = vlaneseq
        %v347 = vand.u32 %v346, 127
        %v348 = vadd.s32 %v347, 128
        %vm349 = vcmp.lt.s32.totalorder %v347, 0
        %v350 = vsub.s32 0, %v347
        %v351 = vsel %vm349, %v350, %v347
        %v352 = vshrl.u32 %v351, 4
        %v353 = vand.u32 %v351, 15
        %v354 = vsub.s32 0, %v353
        %v355 = vsel %vm349, %v354, %v353
        %vm356 = vcmp.lt.s32.totalorder %v348, 0
        %v357 = vsub.s32 0, %v348
        %v358 = vsel %vm356, %v357, %v348
        %v359 = vshrl.u32 %v358, 4
        %v360 = vand.u32 %v358, 15
        %v361 = vsub.s32 0, %v360
        %v362 = vsel %vm356, %v361, %v360
        %vm363 = vcmp.ne.s32.totalorder %v355, 0
        %vm364 = vcmp.ne.s32.totalorder %v362, 0
        %vm365 = vcmp.lt.s32.totalorder %v355, 0
        %vm366 = vcmp.lt.s32.totalorder %v362, 0
        %vm367 = vmand %vm365, %vm363
        %vm368 = vmand %vm366, %vm364
        %v369 = vadd.s32 %v355, 16
        %v370 = vadd.s32 %v362, 16
        %v371 = vsel %vm367, %v369, %v355
        %v372 = vsel %vm368, %v370, %v362
        %vm373 = vcmp.lt.s32.totalorder %v371, 15
        %vm374 = vcmp.lt.s32.totalorder %v372, 15
        %v375 = vsel %vm373, %v344, 0.0
        %v376 = vsel %vm374, %v345, 0.0
        %vm377 = vcmp.gt.s32.totalorder %v371, 0
        %vm378 = vcmp.gt.s32.totalorder %v372, 0
        %v379 = vsel %vm377, %v344, 0.0
        %v380 = vsel %vm378, %v345, 0.0
        %vm381 = vcmask 138240
        %382 = vst.msk [vmem:[#allocation2] sm:$0xff] %vm381, 0.0
        %385 = vrot.lane.b32.xlu0 %v375, 17
        %v386 = vpop.permute.xlu0 %385
        %387 = vrot.lane.b32.xlu0 %v376, 17
        %v388 = vpop.permute.xlu0 %387
        %v389 = vsel %vm381, %v386, %v388
        %vm392 = vcmask 1047688
        %393 = vst.msk [vmem:[#allocation2] sm:$0xff] %vm392, %v386
        %394 = vst [vmem:[#allocation2 + $0x8] sm:$0xff] %v389
        %vm395 = vcmask 130048
        %396 = vst.msk [vmem:[#allocation2 + $0x10] sm:$0xff] %vm395, 0.0
        %399 = vrot.lane.b32.xlu0 %v344, 16
        %v400 = vpop.permute.xlu0 %399
        %401 = vrot.lane.b32.xlu0 %v345, 16
        %v402 = vpop.permute.xlu0 %401
        %v403 = vsel %vm395, %v400, %v402
        %vm406 = vcmask 1047680
        %407 = vst.msk [vmem:[#allocation2 + $0x10] sm:$0xff] %vm406, %v400
        %408 = vst [vmem:[#allocation2 + $0x18] sm:$0xff] %v403
        %vm409 = vcmask 121856
        %410 = vst.msk [vmem:[#allocation2 + $0x20] sm:$0xff] %vm409, 0.0
        %413 = vrot.lane.b32.xlu0 %v379, 15
        %v414 = vpop.permute.xlu0 %413
        %415 = vrot.lane.b32.xlu0 %v380, 15
        %v416 = vpop.permute.xlu0 %415
        %v417 = vsel %vm409, %v414, %v416
        %vm420 = vcmask 1047672
        %421 = vst.msk [vmem:[#allocation2 + $0x20] sm:$0xff] %vm420, %v414
        %422 = vst [vmem:[#allocation2 + $0x28] sm:$0xff] %v417
        %vm423 = vcmask 7168
        %424 = vst.msk [vmem:[#allocation2 + $0x30] sm:$0xff] %vm423, 0.0
        %425 = vrot.lane.b32.xlu0 %v375, 1
        %v426 = vpop.permute.xlu0 %425
        %427 = vrot.lane.b32.xlu0 %v376, 1
        %v428 = vpop.permute.xlu0 %427
        %v429 = vsel %vm423, %v426, %v428
        %vm432 = vcmask 1047560
        %433 = vst.msk [vmem:[#allocation2 + $0x30] sm:$0xff] %vm432, %v426
        %434 = vst [vmem:[#allocation2 + $0x38] sm:$0xff] %v429
        %435 = vst [vmem:[#allocation2 + $0x40] sm:$0xff] %v344
        %436 = vst [vmem:[#allocation2 + $0x48] sm:$0xff] %v345
        %v437 = vld [vmem:[#allocation2] sm:$0xff]
        %v438 = vld [vmem:[#allocation2 + $0x8] sm:$0xff]
        %v439 = vld [vmem:[#allocation2 + $0x10] sm:$0xff]
        %v440 = vld [vmem:[#allocation2 + $0x18] sm:$0xff]
        %v441 = vld [vmem:[#allocation2 + $0x20] sm:$0xff]
        %v442 = vld [vmem:[#allocation2 + $0x28] sm:$0xff]
        %v443 = vld [vmem:[#allocation2 + $0x30] sm:$0xff]
        %v444 = vld [vmem:[#allocation2 + $0x38] sm:$0xff]
        %v445 = vld [vmem:[#allocation2 + $0x40] sm:$0xff]
        %v446 = vld [vmem:[#allocation2 + $0x48] sm:$0xff]
        %v447 = vpack.c.bf16 %v439, %v437
        %v448 = vpack.c.bf16 %v440, %v438
        %v449 = vpack.c.bf16 %v443, %v441
        %v450 = vpack.c.bf16 %v444, %v442
        %v451 = vpack.c.bf16 %v445, %v445
        %v452 = vpack.c.bf16 %v446, %v446
        %v453 = vld [vmem:[%s3] sm:$0xf]
        %v454 = vld [vmem:[%s4] sm:$0xff]
        %456 = vset.pattern.permute.xlu0 0
        %457 = vperm.xlu0 %456, %v454
        %v458 = vpop.permute.xlu0 %457
        %vm460 = vcmask 326656
        %v462 = vsel %vm460, %v453, 0
        %v465 = vsel %vm296, %v451, 0
        %v468 = vsel %vm296, %v452, 0
        %470 = vmatprep.subr.bf16.mxu0 %v448
        %471 = vmatpush1.bf16.msra.mxu0 %v447
        %472 = vmatprep.subr.bf16.mxu0 %v450
        %473 = vmatpush1.bf16.msra.mxu0 %v449
        %474 = vmatprep.subr.bf16.mxu0 %v468
        %475 = vmatpush1.bf16.msra.mxu0 %v465
        %476 = vmatprep.subr.bf16.mxu0 0
        %477 = vmatpush1.bf16.msra.mxu0 0
        %478 = vmatprep.subr.bf16.mxu0 0
        %479 = vmatpush1.bf16.msra.mxu0 0
        %480 = vmatprep.subr.bf16.mxu0 0
        %481 = vmatpush1.bf16.msra.mxu0 0
        %482 = vmatprep.subr.bf16.mxu0 0
        %483 = vmatpush1.bf16.msra.mxu0 0
        %484 = vmatprep.subr.bf16.mxu0 0
        %485 = vmatpush1.bf16.msra.mxu0 0
        %486 = vmatprep.subr.bf16.mxu0 0
        %487 = vmatpush1.bf16.msra.mxu0 0
        %488 = vmatprep.subr.bf16.mxu0 0
        %489 = vmatpush1.bf16.msra.mxu0 0
        %490 = vmatprep.subr.bf16.mxu0 0
        %491 = vmatpush1.bf16.msra.mxu0 0
        %492 = vmatprep.subr.bf16.mxu0 0
        %493 = vmatpush1.bf16.msra.mxu0 0
        %494 = vmatprep.subr.bf16.mxu0 0
        %495 = vmatpush1.bf16.msra.mxu0 0
        %496 = vmatprep.subr.bf16.mxu0 0
        %497 = vmatpush1.bf16.msra.mxu0 0
        %498 = vmatprep.subr.bf16.mxu0 0
        %499 = vmatpush1.bf16.msra.mxu0 0
        %500 = vmatprep.subr.bf16.mxu0 0
        %501 = vmatpush1.bf16.msra.mxu0 0
        %502 = vmatprep.mubr.bf16.mxu0 0
        %503 = vmatmul.mubr.bf16.gmra.mrb[0].mxu0 %v462
        %v504 = vpop.f32.mrb[0].mxu0
        %v505 = vadd.f32 %v458, %v504
        %v506 = vpop.f32.mrb[0].mxu0
        %v507 = vadd.f32 %v458, %v506
        %v508 = vpop.f32.mrb[0].mxu0
        %v509 = vpop.f32.mrb[0].mxu0
        %510 = vdwg.mxu0
        %v511 = vmax.f32 %v505, 0.0
        %v512 = vmax.f32 %v507, 0.0
        %v513 = vpack.c.bf16 %v511, %v511
        %v514 = vpack.c.bf16 %v512, %v512
        %v515 = vld [vmem:[%s5] sm:$0xf]
        %v516 = vld [vmem:[%s6] sm:$0xff]
        %518 = vset.pattern.permute.xlu0 0
        %519 = vperm.xlu0 %518, %v516
        %v520 = vpop.permute.xlu0 %519
        %v523 = vsel %vm292, %v515, 0
        %v526 = vsel %vm296, %v513, 0
        %v529 = vsel %vm296, %v514, 0
        %531 = vmatprep.subr.bf16.mxu0 %v529
        %532 = vmatpush1.bf16.msra.mxu0 %v526
        %533 = vmatprep.subr.bf16.mxu0 0
        %534 = vmatpush1.bf16.msra.mxu0 0
        %535 = vmatprep.subr.bf16.mxu0 0
        %536 = vmatpush1.bf16.msra.mxu0 0
        %537 = vmatprep.subr.bf16.mxu0 0
        %538 = vmatpush1.bf16.msra.mxu0 0
        %539 = vmatprep.subr.bf16.mxu0 0
        %540 = vmatpush1.bf16.msra.mxu0 0
        %541 = vmatprep.subr.bf16.mxu0 0
        %542 = vmatpush1.bf16.msra.mxu0 0
        %543 = vmatprep.subr.bf16.mxu0 0
        %544 = vmatpush1.bf16.msra.mxu0 0
        %545 = vmatprep.subr.bf16.mxu0 0
        %546 = vmatpush1.bf16.msra.mxu0 0
        %547 = vmatprep.subr.bf16.mxu0 0
        %548 = vmatpush1.bf16.msra.mxu0 0
        %549 = vmatprep.subr.bf16.mxu0 0
        %550 = vmatpush1.bf16.msra.mxu0 0
        %551 = vmatprep.subr.bf16.mxu0 0
        %552 = vmatpush1.bf16.msra.mxu0 0
        %553 = vmatprep.subr.bf16.mxu0 0
        %554 = vmatpush1.bf16.msra.mxu0 0
        %555 = vmatprep.subr.bf16.mxu0 0
        %556 = vmatpush1.bf16.msra.mxu0 0
        %557 = vmatprep.subr.bf16.mxu0 0
        %558 = vmatpush1.bf16.msra.mxu0 0
        %559 = vmatprep.subr.bf16.mxu0 0
        %560 = vmatpush1.bf16.msra.mxu0 0
        %561 = vmatprep.subr.bf16.mxu0 0
        %562 = vmatpush1.bf16.msra.mxu0 0
        %563 = vmatprep.mubr.bf16.mxu0 0
        %564 = vmatmul.mubr.bf16.gmra.mrb[0].mxu0 %v523
        %v565 = vpop.f32.mrb[0].mxu0
        %v566 = vadd.f32 %v520, %v565
        %v567 = vpop.f32.mrb[0].mxu0
        %v568 = vadd.f32 %v520, %v567
        %v569 = vpop.f32.mrb[0].mxu0
        %v570 = vpop.f32.mrb[0].mxu0
        %571 = vdwg.mxu0
        %572 = vst [vmem:[%s271] sm:$0xff] %v566
        %573 = vst [vmem:[%s271 + $0x8] sm:$0xff] %v568
        %s574 = sand.u32 %s181, 1
        %s575 = scalar_lea.sflag [#allocation4], %s574
        %s576 = sand.u32 %s181, 1
        %s577 = smul.addr %s576, 16
        %s578 = scalar_lea.vmem [#allocation3], %s577
        // Predicated region
        $region49: #{tpu_custom_call.1} parent=47 // pred_check
          %p579 = pneg %p191
        $region50: #{tpu_custom_call.1} parent=47 // pred_check_branch
          %581 = sbr.rel (%p579) target = $region52
        $region51: #{tpu_custom_call.1} parent=47 // pred_region
          %s583 = ssub.s32 256, 256
          %584 = vsyncadd %s575, %s583
          %s585 = smul.addr %s21, 2
          %s586 = smul.addr %s585, 128
          %s587 = scalar_lea.hbm %s7, %s586
          %s589 = sshll.u32 %s578, 4
          %s590 = int_to_ptr.vmem [resolvable:$true] %s589
          %592 = dma.vmem_to_hbm [thread:$0]  %s590, 256, %s587, %s575
        $region52: #{tpu_custom_call.1} parent=47 // pred_fallthru
          _
      $region48: #{tpu_custom_call.1} parent=5 // pred_fallthru
        _
      %p593 = scmp.le.s32.totalorder 2, %s16
      // Predicated region
      $region53: #{tpu_custom_call.1} parent=5 // pred_check
        %p594 = pneg %p593
      $region54: #{tpu_custom_call.1} parent=5 // pred_check_branch
        %596 = sbr.rel (%p594) target = $region56
      $region55: #{tpu_custom_call.1} parent=5 // pred_region
        %s597 = ssub.s32 %s16, 2
        // Predicated region
        $region57: #{tpu_custom_call.1} parent=55 // pred_check
          %p598 = pneg %p197
        $region58: #{tpu_custom_call.1} parent=55 // pred_check_branch
          %600 = sbr.rel (%p598) target = $region60
        $region59: #{tpu_custom_call.1} parent=55 // pred_region
          %s601 = sand.u32 %s182, 1
          %s602 = scalar_lea.sflag [#allocation4], %s601
          %s603 = sand.u32 %s182, 1
          %s604 = smul.addr %s603, 16
          %s605 = scalar_lea.vmem [#allocation3], %s604
          %606 = dma.done %s602, 256
        $region60: #{tpu_custom_call.1} parent=55 // pred_fallthru
          _
      $region56: #{tpu_custom_call.1} parent=5 // pred_fallthru
        _
    $region6: #{tpu_custom_call.1} parent=1 // loop_footer
      %s20 = sadd.s32 1, %s16
    $region7: #{tpu_custom_call.1} parent=1 // loop_footer_branch
      %15 = sbr.rel target = $region3
    $region8: #{tpu_custom_call.1} parent=1 // loop_exit
      _
    %607 = vsyncpa [#allocation4], 1
    %s608 = scalar_lea.sflag [#allocation4], 1
    %609 = vsyncpa %s608, 1

</llo_original>
